<compile_context>
chip_gen: v7x
topology: tpu7x:2x2x1
jax: 0.10.0
libtpu: 0.0.40
codegen_flags: <defaults>
</compile_context>

<pallas_src>
import functools

import jax
import jax.numpy as jnp
from jax import lax
from jax.experimental import pallas as pl
from jax.experimental.pallas import tpu as pltpu


# ----------------------------------------------------------------------------
# Fused kernel.
# Packed parameter layout (lanes 0:H = instance projector, lanes H:2H = cluster):
#   w_ref  : (2, 2H, 2H)  block-diagonal [w1_i (+) w1_c], [pad(w2_i) (+) pad(w2_c)]
#   vec_ref: (8, 2H) rows: 0 bn1_g | 1 bn1_b | 2 lin1_b | 3 bn2_g | 4 bn2_b
#                          5 lin2_b | 6 bn3_g | 7 bn3_b
# ----------------------------------------------------------------------------
def fused_network_kernel(emb_i_ref, mask_i_ref, emb_j_ref, mask_j_ref,
                         w_ref, vec_ref, out_ref, *, batch, seq, hidden):
    eps = 1e-5
    B, H = batch, hidden

    # ---- masked mean pooling (one MXU matmul per view) -----------------------
    # pooled[r, :] = sum_s mask[r, s] * emb[r, s, :]
    # via a block-diagonal, mask-weighted selection matrix (B, B*S) @ (B*S, H).
    def pool(emb_ref, mask_ref):
        mask_row = mask_ref[...]                                     # (1, B*S)
        row = lax.broadcasted_iota(jnp.int32, (B, B * seq), 0)
        col = lax.broadcasted_iota(jnp.int32, (B, B * seq), 1)
        if seq & (seq - 1) == 0:                       # power-of-two: single shift+cmp
            owner = col >> (seq.bit_length() - 1)
        else:                                          # general fallback: range test
            owner = jnp.where((col >= row * seq) & (col < row * seq + seq), row, -1)
        sel = jnp.where(owner == row, mask_row, 0.0)                 # (B, B*S)
        pooled = jnp.dot(sel, emb_ref[...],
                         preferred_element_type=jnp.float32)        # (B, H)
        lens = jnp.sum(sel, axis=1, keepdims=True)                   # (B, 1)
        inv = pl.reciprocal(jnp.maximum(lens, 1e-9), approx=True)    # EUP, ~1e-3 rel
        return pooled * inv

    h = jnp.concatenate([pool(emb_i_ref, mask_i_ref),
                         pool(emb_j_ref, mask_j_ref)], axis=0)       # (2B, H)

    v = vec_ref[...]                                                 # (8, 2H)

    # ---- BatchNorm1d (train-mode batch stats per original B-row half) --------
    # var = E[x^2] - mu^2 so both reductions run off x in parallel.
    def bn_relu(x, g, b):
        f = x.shape[-1]
        x3 = x.reshape(2, B, f)
        mu = jnp.mean(x3, axis=1, keepdims=True)
        m2 = jnp.mean(x3 * x3, axis=1, keepdims=True)
        var = jnp.maximum(m2 - mu * mu, 0.0)           # biased var, like PyTorch train
        y = (x3 - mu) * lax.rsqrt(var + eps) * g + b
        return jnp.maximum(y, 0.0).reshape(x.shape)

    # BN1: h is shared by both projectors -> normalize once, then the two affine
    # branches sit side-by-side in lanes [0:H] (instance) and [H:2H] (cluster).
    h3 = h.reshape(2, B, H)
    mu = jnp.mean(h3, axis=1, keepdims=True)
    m2 = jnp.mean(h3 * h3, axis=1, keepdims=True)
    hn = ((h3 - mu) * lax.rsqrt(jnp.maximum(m2 - mu * mu, 0.0) + eps)).reshape(2 * B, H)
    hn2 = jnp.concatenate([hn, hn], axis=1)                          # (2B, 2H)
    x = jnp.maximum(hn2 * v[0:1, :] + v[1:2, :], 0.0)

    # Linear1 (block-diag) -> BN2 -> ReLU -> Linear2 (block-diag) -> BN3 -> ReLU
    x = jnp.dot(x, w_ref[0], preferred_element_type=jnp.float32) + v[2:3, :]
    x = bn_relu(x, v[3:4, :], v[4:5, :])
    x = jnp.dot(x, w_ref[1], preferred_element_type=jnp.float32) + v[5:6, :]
    x = bn_relu(x, v[6:7, :], v[7:8, :])                             # (2B, 2H)

    # instance half: row-wise L2 normalization.  Padded lanes of the instance half
    # are exactly 0 (w2/b2/bn3 zero-padded), so they contribute nothing to the norm.
    z = x[:, :H]
    c = x[:, H:]
    inv_nrm = lax.rsqrt(jnp.maximum(jnp.sum(z * z, axis=1, keepdims=True), 1e-24))
    out_ref[...] = jnp.concatenate([z * inv_nrm, c], axis=1)         # (2B, 2H)


# ----------------------------------------------------------------------------
# Parameter construction / packing.
# Linear weights are stored transposed to (in, out) for x @ W.
# ----------------------------------------------------------------------------
def make_projector_params(key, hidden, out_dim):
    k1, k2, k3, k4 = jax.random.split(key, 4)
    lim = 1.0 / jnp.sqrt(hidden)
    return {
        "bn1_g": jnp.ones((1, hidden), jnp.float32),
        "bn1_b": jnp.zeros((1, hidden), jnp.float32),
        "w1": jax.random.uniform(k1, (hidden, hidden), jnp.float32, -lim, lim),
        "b1": jax.random.uniform(k2, (1, hidden), jnp.float32, -lim, lim),
        "bn2_g": jnp.ones((1, hidden), jnp.float32),
        "bn2_b": jnp.zeros((1, hidden), jnp.float32),
        "w2": jax.random.uniform(k3, (hidden, out_dim), jnp.float32, -lim, lim),
        "b2": jax.random.uniform(k4, (1, out_dim), jnp.float32, -lim, lim),
        "bn3_g": jnp.ones((1, out_dim), jnp.float32),
        "bn3_b": jnp.zeros((1, out_dim), jnp.float32),
    }


def pack_params(inst, clus, hidden):
    """Pack both projectors into (W: (2, 2H, 2H) block-diag, vec: (8, 2H)).

    IMPORTANT: the zero padding of w2 / b2 / bn3_g / bn3_b (out_dim -> H lanes) is a
    correctness invariant — it keeps the padded output lanes exactly 0, which the
    in-kernel L2 norm and the wrapper slicing rely on.
    """
    H = hidden
    for p in (inst, clus):
        assert p["w2"].shape[1] <= H, "output dim must fit in the padded lane width"

    def pad_cols(v):
        return jnp.pad(v, ((0, 0), (0, H - v.shape[-1])))

    def blockdiag(a, b):
        m = jnp.zeros((2 * H, 2 * H), jnp.float32)
        return m.at[:H, :H].set(a).at[H:, H:].set(b)

    W = jnp.stack([blockdiag(inst["w1"], clus["w1"]),
                   blockdiag(pad_cols(inst["w2"]), pad_cols(clus["w2"]))], axis=0)

    def lane_cat(a, b):
        return jnp.concatenate([a, b], axis=1)        # (1, 2H)

    vec = jnp.concatenate([
        lane_cat(inst["bn1_g"], clus["bn1_g"]),
        lane_cat(inst["bn1_b"], clus["bn1_b"]),
        lane_cat(inst["b1"], clus["b1"]),
        lane_cat(inst["bn2_g"], clus["bn2_g"]),
        lane_cat(inst["bn2_b"], clus["bn2_b"]),
        lane_cat(pad_cols(inst["b2"]), pad_cols(clus["b2"])),
        lane_cat(pad_cols(inst["bn3_g"]), pad_cols(clus["bn3_g"])),
        lane_cat(pad_cols(inst["bn3_b"]), pad_cols(clus["bn3_b"])),
    ], axis=0)                                        # (8, 2H)
    return W.astype(jnp.float32), vec.astype(jnp.float32)


# ----------------------------------------------------------------------------
# Network.forward(x_i, x_j) equivalent (starting from backbone hidden states).
# ----------------------------------------------------------------------------
@functools.partial(jax.jit, static_argnames=("feature_dim", "class_num"))
def network_forward(emb_i, mask_i, emb_j, mask_j, W, vec, feature_dim, class_num):
    B, S, H = emb_i.shape
    # contiguous reshapes only (no HBM copy), no concatenation of the embeddings
    ei = emb_i.reshape(B * S, H).astype(jnp.float32)
    ej = emb_j.reshape(B * S, H).astype(jnp.float32)
    mi = mask_i.reshape(1, B * S).astype(jnp.float32)
    mj = mask_j.reshape(1, B * S).astype(jnp.float32)

    vmem = pl.BlockSpec(memory_space=pltpu.MemorySpace.VMEM)
    kernel = functools.partial(fused_network_kernel, batch=B, seq=S, hidden=H)
    zc = pl.pallas_call(
        kernel,
        out_shape=jax.ShapeDtypeStruct((2 * B, 2 * H), jnp.float32),
        in_specs=[vmem] * 6,
        out_specs=vmem,
    )(ei, mi, ej, mj, W, vec)

    z_i = zc[:B, :feature_dim]
    z_j = zc[B:, :feature_dim]
    c_i = zc[:B, H:H + class_num]
    c_j = zc[B:, H:H + class_num]
    return z_i, z_j, c_i, c_j, 0, 0


# ----------------------------------------------------------------------------
# Pure-JAX reference (mirrors the PyTorch module in train mode) for sanity check.
# ----------------------------------------------------------------------------
def reference_forward(emb_i, mask_i, emb_j, mask_j, inst_raw, clus_raw):
    def pool(e, m):
        m = m[:, :, None]
        return jnp.sum(e * m, axis=1) / jnp.maximum(jnp.sum(m, axis=1), 1e-9)

    def bn_relu(x, g, b):
        mu = jnp.mean(x, axis=0, keepdims=True)
        var = jnp.mean((x - mu) ** 2, axis=0, keepdims=True)
        return jnp.maximum((x - mu) * lax.rsqrt(var + 1e-5) * g + b, 0.0)

    def proj(h, p, l2):
        x = bn_relu(h, p["bn1_g"], p["bn1_b"])
        x = x @ p["w1"] + p["b1"]
        x = bn_relu(x, p["bn2_g"], p["bn2_b"])
        x = x @ p["w2"] + p["b2"]
        x = bn_relu(x, p["bn3_g"], p["bn3_b"])
        if l2:
            nrm = jnp.sqrt(jnp.sum(x * x, axis=1, keepdims=True))
            x = x / jnp.maximum(nrm, 1e-12)
        return x

    h_i = pool(emb_i, mask_i)
    h_j = pool(emb_j, mask_j)
    return (proj(h_i, inst_raw, True), proj(h_j, inst_raw, True),
            proj(h_i, clus_raw, False), proj(h_j, clus_raw, False))


if __name__ == "__main__":
    B, S, H = 8, 16, 128          # batch, seq (max_length<=32), hidden_size
    FEATURE_DIM = 64
    CLASS_NUM = 16

    key = jax.random.PRNGKey(0)
    k_ei, k_ej, k_mi, k_mj, k_inst, k_clus = jax.random.split(key, 6)

    emb_i = jax.random.normal(k_ei, (B, S, H), jnp.float32)
    emb_j = jax.random.normal(k_ej, (B, S, H), jnp.float32)
    # attention masks: contiguous prefix of ones (padded token batches)
    len_i = jax.random.randint(k_mi, (B,), 4, S + 1)
    len_j = jax.random.randint(k_mj, (B,), 4, S + 1)
    pos = jnp.arange(S)[None, :]
    mask_i = (pos < len_i[:, None]).astype(jnp.float32)
    mask_j = (pos < len_j[:, None]).astype(jnp.float32)

    inst_raw = make_projector_params(k_inst, H, FEATURE_DIM)
    clus_raw = make_projector_params(k_clus, H, CLASS_NUM)
    W_packed, vec_packed = pack_params(inst_raw, clus_raw, H)

    z_i, z_j, c_i, c_j, _, _ = network_forward(
        emb_i, mask_i, emb_j, mask_j, W_packed, vec_packed,
        feature_dim=FEATURE_DIM, class_num=CLASS_NUM)
    jax.block_until_ready((z_i, z_j, c_i, c_j))

    assert z_i.shape == (B, FEATURE_DIM) and z_j.shape == (B, FEATURE_DIM)
    assert c_i.shape == (B, CLASS_NUM) and c_j.shape == (B, CLASS_NUM)

    # sanity check vs. pure-JAX reference (tolerance covers MXU f32 rounding and the
    # approx EUP reciprocal/rsqrt, both ~1e-3 relative)
    rz_i, rz_j, rc_i, rc_j = reference_forward(
        emb_i, mask_i, emb_j, mask_j, inst_raw, clus_raw)
    for got, ref in ((z_i, rz_i), (z_j, rz_j), (c_i, rc_i), (c_j, rc_j)):
        err = float(jnp.max(jnp.abs(got - ref)))
        assert err < 5e-2, f"max abs error too large: {err}"

    print("KERNEL_OK")
</pallas_src>

<mosaic_0001>
module attributes {stable_mosaic.version = 11 : i64} {
  func.func @fused_network_kernel(%arg0: memref<128x128xf32, #tpu.memory_space<vmem>>, %arg1: memref<1x128xf32, #tpu.memory_space<vmem>>, %arg2: memref<128x128xf32, #tpu.memory_space<vmem>>, %arg3: memref<1x128xf32, #tpu.memory_space<vmem>>, %arg4: memref<2x256x256xf32, #tpu.memory_space<vmem>>, %arg5: memref<8x256xf32, #tpu.memory_space<vmem>>, %arg6: memref<16x256xf32, #tpu.memory_space<vmem>>) attributes {dimension_semantics = [], scalar_prefetch = 0 : i64, scratch_operands = 0 : i64, tpu.core_type = #tpu.core_type<tc>} {
    %c0 = arith.constant 0 : index
    %c0_0 = arith.constant 0 : index
    %0 = vector.load %arg1[%c0, %c0_0] : memref<1x128xf32, #tpu.memory_space<vmem>>, vector<1x128xf32>
    %1 = tpu.iota {dimensions = array<i32: 0>} : vector<8x128xi32>
    %2 = tpu.iota {dimensions = array<i32: 1>} : vector<8x128xi32>
    %c4_i32 = arith.constant 4 : i32
    %3 = vector.broadcast %c4_i32 : i32 to vector<8x128xi32>
    %4 = arith.shrsi %2, %3 : vector<8x128xi32>
    %5 = arith.cmpi eq, %4, %1 : vector<8x128xi32>
    %cst = arith.constant 0.000000e+00 : f32
    %6 = vector.shape_cast %0 : vector<1x128xf32> to vector<1x128xf32>
    %7 = vector.broadcast %6 : vector<1x128xf32> to vector<8x128xf32>
    %8 = vector.broadcast %cst : f32 to vector<8x128xf32>
    %9 = arith.select %5, %7, %8 : vector<8x128xi1>, vector<8x128xf32>
    %c0_1 = arith.constant 0 : index
    %c0_2 = arith.constant 0 : index
    %10 = vector.load %arg0[%c0_1, %c0_2] : memref<128x128xf32, #tpu.memory_space<vmem>>, vector<128x128xf32>
    %cst_3 = arith.constant dense<0.000000e+00> : vector<8x128xf32>
    %11 = tpu.matmul %9, %10, %cst_3 {dimension_numbers = #tpu.dot_dimension_numbers<[1], [0], [0], [1], [0, 0, 1, 1], [], []>} : vector<8x128xf32>, vector<128x128xf32>, vector<8x128xf32> -> vector<8x128xf32>
    %cst_4 = arith.constant dense<0.000000e+00> : vector<8xf32>
    %12 = vector.multi_reduction <add>, %9, %cst_4 [1] : vector<8x128xf32> to vector<8xf32>
    %13 = vector.shape_cast %12 : vector<8xf32> to vector<8x1xf32>
    %cst_5 = arith.constant 9.99999971E-10 : f32
    %14 = vector.broadcast %cst_5 : f32 to vector<8x1xf32>
    %15 = arith.maximumf %13, %14 : vector<8x1xf32>
    %16 = tpu.reciprocal %15 {approx = true} : vector<8x1xf32> -> vector<8x1xf32>
    %17 = vector.broadcast %16 : vector<8x1xf32> to vector<8x128xf32>
    %18 = arith.mulf %11, %17 : vector<8x128xf32>
    %c0_6 = arith.constant 0 : index
    %c0_7 = arith.constant 0 : index
    %19 = vector.load %arg3[%c0_6, %c0_7] : memref<1x128xf32, #tpu.memory_space<vmem>>, vector<1x128xf32>
    %20 = tpu.iota {dimensions = array<i32: 0>} : vector<8x128xi32>
    %21 = tpu.iota {dimensions = array<i32: 1>} : vector<8x128xi32>
    %c4_i32_8 = arith.constant 4 : i32
    %22 = vector.broadcast %c4_i32_8 : i32 to vector<8x128xi32>
    %23 = arith.shrsi %21, %22 : vector<8x128xi32>
    %24 = arith.cmpi eq, %23, %20 : vector<8x128xi32>
    %cst_9 = arith.constant 0.000000e+00 : f32
    %25 = vector.shape_cast %19 : vector<1x128xf32> to vector<1x128xf32>
    %26 = vector.broadcast %25 : vector<1x128xf32> to vector<8x128xf32>
    %27 = vector.broadcast %cst_9 : f32 to vector<8x128xf32>
    %28 = arith.select %24, %26, %27 : vector<8x128xi1>, vector<8x128xf32>
    %c0_10 = arith.constant 0 : index
    %c0_11 = arith.constant 0 : index
    %29 = vector.load %arg2[%c0_10, %c0_11] : memref<128x128xf32, #tpu.memory_space<vmem>>, vector<128x128xf32>
    %cst_12 = arith.constant dense<0.000000e+00> : vector<8x128xf32>
    %30 = tpu.matmul %28, %29, %cst_12 {dimension_numbers = #tpu.dot_dimension_numbers<[1], [0], [0], [1], [0, 0, 1, 1], [], []>} : vector<8x128xf32>, vector<128x128xf32>, vector<8x128xf32> -> vector<8x128xf32>
    %cst_13 = arith.constant dense<0.000000e+00> : vector<8xf32>
    %31 = vector.multi_reduction <add>, %28, %cst_13 [1] : vector<8x128xf32> to vector<8xf32>
    %32 = vector.shape_cast %31 : vector<8xf32> to vector<8x1xf32>
    %cst_14 = arith.constant 9.99999971E-10 : f32
    %33 = vector.broadcast %cst_14 : f32 to vector<8x1xf32>
    %34 = arith.maximumf %32, %33 : vector<8x1xf32>
    %35 = tpu.reciprocal %34 {approx = true} : vector<8x1xf32> -> vector<8x1xf32>
    %36 = vector.broadcast %35 : vector<8x1xf32> to vector<8x128xf32>
    %37 = arith.mulf %30, %36 : vector<8x128xf32>
    %38 = tpu.concatenate %18, %37 in 0 : vector<8x128xf32>, vector<8x128xf32> -> vector<16x128xf32>
    %c0_15 = arith.constant 0 : index
    %c0_16 = arith.constant 0 : index
    %39 = vector.load %arg5[%c0_15, %c0_16] : memref<8x256xf32, #tpu.memory_space<vmem>>, vector<8x256xf32>
    %40 = vector.shape_cast %38 : vector<16x128xf32> to vector<2x8x128xf32>
    %cst_17 = arith.constant dense<0.000000e+00> : vector<2x128xf32>
    %41 = vector.multi_reduction <add>, %40, %cst_17 [1] : vector<2x8x128xf32> to vector<2x128xf32>
    %42 = vector.shape_cast %41 : vector<2x128xf32> to vector<2x1x128xf32>
    %cst_18 = arith.constant 8.000000e+00 : f32
    %43 = vector.broadcast %cst_18 : f32 to vector<2x1x128xf32>
    %44 = arith.divf %42, %43 : vector<2x1x128xf32>
    %45 = arith.mulf %40, %40 : vector<2x8x128xf32>
    %cst_19 = arith.constant dense<0.000000e+00> : vector<2x128xf32>
    %46 = vector.multi_reduction <add>, %45, %cst_19 [1] : vector<2x8x128xf32> to vector<2x128xf32>
    %47 = vector.shape_cast %46 : vector<2x128xf32> to vector<2x1x128xf32>
    %cst_20 = arith.constant 8.000000e+00 : f32
    %48 = vector.broadcast %cst_20 : f32 to vector<2x1x128xf32>
    %49 = arith.divf %47, %48 : vector<2x1x128xf32>
    %50 = vector.broadcast %44 : vector<2x1x128xf32> to vector<2x8x128xf32>
    %51 = arith.subf %40, %50 : vector<2x8x128xf32>
    %52 = arith.mulf %44, %44 : vector<2x1x128xf32>
    %53 = arith.subf %49, %52 : vector<2x1x128xf32>
    %cst_21 = arith.constant 0.000000e+00 : f32
    %54 = vector.broadcast %cst_21 : f32 to vector<2x1x128xf32>
    %55 = arith.maximumf %53, %54 : vector<2x1x128xf32>
    %cst_22 = arith.constant 9.99999974E-6 : f32
    %56 = vector.broadcast %cst_22 : f32 to vector<2x1x128xf32>
    %57 = arith.addf %55, %56 : vector<2x1x128xf32>
    %58 = math.rsqrt %57 : vector<2x1x128xf32>
    %59 = vector.broadcast %58 : vector<2x1x128xf32> to vector<2x8x128xf32>
    %60 = arith.mulf %51, %59 : vector<2x8x128xf32>
    %61 = vector.shape_cast %60 : vector<2x8x128xf32> to vector<16x128xf32>
    %62 = tpu.concatenate %61, %61 in 1 : vector<16x128xf32>, vector<16x128xf32> -> vector<16x256xf32>
    %63 = vector.extract_strided_slice %39 {offsets = [0, 0], sizes = [1, 256], strides = [1, 1]} : vector<8x256xf32> to vector<1x256xf32>
    %64 = vector.broadcast %63 : vector<1x256xf32> to vector<16x256xf32>
    %65 = arith.mulf %62, %64 : vector<16x256xf32>
    %66 = vector.extract_strided_slice %39 {offsets = [1, 0], sizes = [1, 256], strides = [1, 1]} : vector<8x256xf32> to vector<1x256xf32>
    %67 = vector.broadcast %66 : vector<1x256xf32> to vector<16x256xf32>
    %68 = arith.addf %65, %67 : vector<16x256xf32>
    %cst_23 = arith.constant 0.000000e+00 : f32
    %69 = vector.broadcast %cst_23 : f32 to vector<16x256xf32>
    %70 = arith.maximumf %68, %69 : vector<16x256xf32>
    %c0_24 = arith.constant 0 : index
    %c0_25 = arith.constant 0 : index
    %c0_26 = arith.constant 0 : index
    %71 = vector.load %arg4[%c0_24, %c0_25, %c0_26] : memref<2x256x256xf32, #tpu.memory_space<vmem>>, vector<1x256x256xf32>
    %72 = vector.shape_cast %71 : vector<1x256x256xf32> to vector<256x256xf32>
    %cst_27 = arith.constant dense<0.000000e+00> : vector<16x256xf32>
    %73 = tpu.matmul %70, %72, %cst_27 {dimension_numbers = #tpu.dot_dimension_numbers<[1], [0], [0], [1], [0, 0, 1, 1], [], []>} : vector<16x256xf32>, vector<256x256xf32>, vector<16x256xf32> -> vector<16x256xf32>
    %74 = vector.extract_strided_slice %39 {offsets = [2, 0], sizes = [1, 256], strides = [1, 1]} : vector<8x256xf32> to vector<1x256xf32>
    %75 = vector.broadcast %74 : vector<1x256xf32> to vector<16x256xf32>
    %76 = arith.addf %73, %75 : vector<16x256xf32>
    %77 = vector.extract_strided_slice %39 {offsets = [3, 0], sizes = [1, 256], strides = [1, 1]} : vector<8x256xf32> to vector<1x256xf32>
    %78 = vector.extract_strided_slice %39 {offsets = [4, 0], sizes = [1, 256], strides = [1, 1]} : vector<8x256xf32> to vector<1x256xf32>
    %79 = vector.shape_cast %76 : vector<16x256xf32> to vector<2x8x256xf32>
    %cst_28 = arith.constant dense<0.000000e+00> : vector<2x256xf32>
    %80 = vector.multi_reduction <add>, %79, %cst_28 [1] : vector<2x8x256xf32> to vector<2x256xf32>
    %81 = vector.shape_cast %80 : vector<2x256xf32> to vector<2x1x256xf32>
    %cst_29 = arith.constant 8.000000e+00 : f32
    %82 = vector.broadcast %cst_29 : f32 to vector<2x1x256xf32>
    %83 = arith.divf %81, %82 : vector<2x1x256xf32>
    %84 = arith.mulf %79, %79 : vector<2x8x256xf32>
    %cst_30 = arith.constant dense<0.000000e+00> : vector<2x256xf32>
    %85 = vector.multi_reduction <add>, %84, %cst_30 [1] : vector<2x8x256xf32> to vector<2x256xf32>
    %86 = vector.shape_cast %85 : vector<2x256xf32> to vector<2x1x256xf32>
    %cst_31 = arith.constant 8.000000e+00 : f32
    %87 = vector.broadcast %cst_31 : f32 to vector<2x1x256xf32>
    %88 = arith.divf %86, %87 : vector<2x1x256xf32>
    %89 = arith.mulf %83, %83 : vector<2x1x256xf32>
    %90 = arith.subf %88, %89 : vector<2x1x256xf32>
    %cst_32 = arith.constant 0.000000e+00 : f32
    %91 = vector.broadcast %cst_32 : f32 to vector<2x1x256xf32>
    %92 = arith.maximumf %90, %91 : vector<2x1x256xf32>
    %93 = vector.broadcast %83 : vector<2x1x256xf32> to vector<2x8x256xf32>
    %94 = arith.subf %79, %93 : vector<2x8x256xf32>
    %cst_33 = arith.constant 9.99999974E-6 : f32
    %95 = vector.broadcast %cst_33 : f32 to vector<2x1x256xf32>
    %96 = arith.addf %92, %95 : vector<2x1x256xf32>
    %97 = math.rsqrt %96 : vector<2x1x256xf32>
    %98 = vector.broadcast %97 : vector<2x1x256xf32> to vector<2x8x256xf32>
    %99 = arith.mulf %94, %98 : vector<2x8x256xf32>
    %100 = vector.shape_cast %77 : vector<1x256xf32> to vector<1x1x256xf32>
    %101 = vector.broadcast %100 : vector<1x1x256xf32> to vector<2x8x256xf32>
    %102 = arith.mulf %99, %101 : vector<2x8x256xf32>
    %103 = vector.shape_cast %78 : vector<1x256xf32> to vector<1x1x256xf32>
    %104 = vector.broadcast %103 : vector<1x1x256xf32> to vector<2x8x256xf32>
    %105 = arith.addf %102, %104 : vector<2x8x256xf32>
    %cst_34 = arith.constant 0.000000e+00 : f32
    %106 = vector.broadcast %cst_34 : f32 to vector<2x8x256xf32>
    %107 = arith.maximumf %105, %106 : vector<2x8x256xf32>
    %108 = vector.shape_cast %107 : vector<2x8x256xf32> to vector<16x256xf32>
    %c1 = arith.constant 1 : index
    %c0_35 = arith.constant 0 : index
    %c0_36 = arith.constant 0 : index
    %109 = vector.load %arg4[%c1, %c0_35, %c0_36] : memref<2x256x256xf32, #tpu.memory_space<vmem>>, vector<1x256x256xf32>
    %110 = vector.shape_cast %109 : vector<1x256x256xf32> to vector<256x256xf32>
    %cst_37 = arith.constant dense<0.000000e+00> : vector<16x256xf32>
    %111 = tpu.matmul %108, %110, %cst_37 {dimension_numbers = #tpu.dot_dimension_numbers<[1], [0], [0], [1], [0, 0, 1, 1], [], []>} : vector<16x256xf32>, vector<256x256xf32>, vector<16x256xf32> -> vector<16x256xf32>
    %112 = vector.extract_strided_slice %39 {offsets = [5, 0], sizes = [1, 256], strides = [1, 1]} : vector<8x256xf32> to vector<1x256xf32>
    %113 = vector.broadcast %112 : vector<1x256xf32> to vector<16x256xf32>
    %114 = arith.addf %111, %113 : vector<16x256xf32>
    %115 = vector.extract_strided_slice %39 {offsets = [6, 0], sizes = [1, 256], strides = [1, 1]} : vector<8x256xf32> to vector<1x256xf32>
    %116 = vector.extract_strided_slice %39 {offsets = [7, 0], sizes = [1, 256], strides = [1, 1]} : vector<8x256xf32> to vector<1x256xf32>
    %117 = vector.shape_cast %114 : vector<16x256xf32> to vector<2x8x256xf32>
    %cst_38 = arith.constant dense<0.000000e+00> : vector<2x256xf32>
    %118 = vector.multi_reduction <add>, %117, %cst_38 [1] : vector<2x8x256xf32> to vector<2x256xf32>
    %119 = vector.shape_cast %118 : vector<2x256xf32> to vector<2x1x256xf32>
    %cst_39 = arith.constant 8.000000e+00 : f32
    %120 = vector.broadcast %cst_39 : f32 to vector<2x1x256xf32>
    %121 = arith.divf %119, %120 : vector<2x1x256xf32>
    %122 = arith.mulf %117, %117 : vector<2x8x256xf32>
    %cst_40 = arith.constant dense<0.000000e+00> : vector<2x256xf32>
    %123 = vector.multi_reduction <add>, %122, %cst_40 [1] : vector<2x8x256xf32> to vector<2x256xf32>
    %124 = vector.shape_cast %123 : vector<2x256xf32> to vector<2x1x256xf32>
    %cst_41 = arith.constant 8.000000e+00 : f32
    %125 = vector.broadcast %cst_41 : f32 to vector<2x1x256xf32>
    %126 = arith.divf %124, %125 : vector<2x1x256xf32>
    %127 = arith.mulf %121, %121 : vector<2x1x256xf32>
    %128 = arith.subf %126, %127 : vector<2x1x256xf32>
    %cst_42 = arith.constant 0.000000e+00 : f32
    %129 = vector.broadcast %cst_42 : f32 to vector<2x1x256xf32>
    %130 = arith.maximumf %128, %129 : vector<2x1x256xf32>
    %131 = vector.broadcast %121 : vector<2x1x256xf32> to vector<2x8x256xf32>
    %132 = arith.subf %117, %131 : vector<2x8x256xf32>
    %cst_43 = arith.constant 9.99999974E-6 : f32
    %133 = vector.broadcast %cst_43 : f32 to vector<2x1x256xf32>
    %134 = arith.addf %130, %133 : vector<2x1x256xf32>
    %135 = math.rsqrt %134 : vector<2x1x256xf32>
    %136 = vector.broadcast %135 : vector<2x1x256xf32> to vector<2x8x256xf32>
    %137 = arith.mulf %132, %136 : vector<2x8x256xf32>
    %138 = vector.shape_cast %115 : vector<1x256xf32> to vector<1x1x256xf32>
    %139 = vector.broadcast %138 : vector<1x1x256xf32> to vector<2x8x256xf32>
    %140 = arith.mulf %137, %139 : vector<2x8x256xf32>
    %141 = vector.shape_cast %116 : vector<1x256xf32> to vector<1x1x256xf32>
    %142 = vector.broadcast %141 : vector<1x1x256xf32> to vector<2x8x256xf32>
    %143 = arith.addf %140, %142 : vector<2x8x256xf32>
    %cst_44 = arith.constant 0.000000e+00 : f32
    %144 = vector.broadcast %cst_44 : f32 to vector<2x8x256xf32>
    %145 = arith.maximumf %143, %144 : vector<2x8x256xf32>
    %146 = vector.shape_cast %145 : vector<2x8x256xf32> to vector<16x256xf32>
    %147 = vector.extract_strided_slice %146 {offsets = [0, 0], sizes = [16, 128], strides = [1, 1]} : vector<16x256xf32> to vector<16x128xf32>
    %148 = vector.extract_strided_slice %146 {offsets = [0, 128], sizes = [16, 128], strides = [1, 1]} : vector<16x256xf32> to vector<16x128xf32>
    %149 = arith.mulf %147, %147 : vector<16x128xf32>
    %cst_45 = arith.constant dense<0.000000e+00> : vector<16xf32>
    %150 = vector.multi_reduction <add>, %149, %cst_45 [1] : vector<16x128xf32> to vector<16xf32>
    %151 = vector.shape_cast %150 : vector<16xf32> to vector<16x1xf32>
    %cst_46 = arith.constant 1.000000e-24 : f32
    %152 = vector.broadcast %cst_46 : f32 to vector<16x1xf32>
    %153 = arith.maximumf %151, %152 : vector<16x1xf32>
    %154 = math.rsqrt %153 : vector<16x1xf32>
    %155 = vector.broadcast %154 : vector<16x1xf32> to vector<16x128xf32>
    %156 = arith.mulf %147, %155 : vector<16x128xf32>
    %157 = tpu.concatenate %156, %148 in 1 : vector<16x128xf32>, vector<16x128xf32> -> vector<16x256xf32>
    %c0_47 = arith.constant 0 : index
    %c0_48 = arith.constant 0 : index
    %158 = vector.load %arg6[%c0_47, %c0_48] : memref<16x256xf32, #tpu.memory_space<vmem>>, vector<16x256xf32>
    tpu.vector_store %arg6[%c0_47, %c0_48], %157 {strides = array<i32>} : memref<16x256xf32, #tpu.memory_space<vmem>>, vector<16x256xf32>,
    return
  }
}

</mosaic_0001>

<llo_original>
// kernel: network_forward.1
$region0: #{network_forward.1}
  #allocation0 [shape = 'u32[]', space=smem, size = 0x4, offset = 0x4, fixed_abs, tag = 'smem constant byte address 0x4 - core index']
  #allocation1 [shape = 'u32[144,128]{1,0:T(1,128)}', space=vmem, size = 0x12000, scoped, tag = 'internal scratch']
  %s0 = inlined_call_operand.hbm [shape: f32[128,128], index: 0, kind: input, shape index: {}]
  %s1 = inlined_call_operand.vmem [shape: f32[1,128], index: 1, kind: input, shape index: {}]
  %s2 = inlined_call_operand.hbm [shape: f32[128,128], index: 2, kind: input, shape index: {}]
  %s3 = inlined_call_operand.vmem [shape: f32[1,128], index: 3, kind: input, shape index: {}]
  %s4 = inlined_call_operand.hbm [shape: f32[2,256,256], index: 4, kind: input, shape index: {}]
  %s5 = inlined_call_operand.vmem [shape: f32[8,256], index: 5, kind: input, shape index: {}]
  %s6 = inlined_call_operand.vmem [shape: f32[16,256], index: 6, kind: output, shape index: {}]
  %s7 = sld [smem:[#allocation0]]
  $region46: #{network_forward.1} parent=0
    _
  %s9 = ssub.s32 1, %s7
  %s10 = scalar_select 0, %s9, %s7
  $region1: #{network_forward.1} parent=0
    #allocation2 [shape = 'u8[65536]{0}', space=vmem, size = 0x10000, scoped, tag = 'input window, operand 0, single buffered']
    #allocation3 [shape = 's32[1]{0}', space=sflag, size = 0x4, scoped, tag = 'scoped memory for network_forward.1']
    #allocation4 [shape = 'u8[65536]{0}', space=vmem, size = 0x10000, scoped, tag = 'input window, operand 2, single buffered']
    #allocation5 [shape = 's32[1]{0}', space=sflag, size = 0x4, scoped, tag = 'scoped memory for network_forward.1']
    #allocation6 [shape = 'u8[524288]{0}', space=vmem, size = 0x80000, scoped, tag = 'input window, operand 4, single buffered']
    %11 = vsyncpa [#allocation3], 0
    %12 = vsyncpa [#allocation5], 0
    // Predicated region
    $region2: #{network_forward.1} parent=1 // pred_check
      _
    $region3: #{network_forward.1} parent=1 // pred_check_branch
      %14 = sbr.rel (0) target = $region5
    $region4: #{network_forward.1} parent=1 // pred_region
      %s16 = ssub.s32 2048, 2048
      %17 = vsyncadd [#allocation3], %s16
      %s18 = sshll.u32 [#allocation2], 4
      %s19 = int_to_ptr.vmem [resolvable:$true] %s18
      %24 = dma.hbm_to_vmem [thread:$0]  %s0, 2048, %s19, [#allocation3], 128, 128, 8
    $region5: #{network_forward.1} parent=1 // pred_fallthru
      _
    // Predicated region
    $region6: #{network_forward.1} parent=1 // pred_check
      _
    $region7: #{network_forward.1} parent=1 // pred_check_branch
      %26 = sbr.rel (0) target = $region9
    $region8: #{network_forward.1} parent=1 // pred_region
      _
    $region9: #{network_forward.1} parent=1 // pred_fallthru
      _
    // Predicated region
    $region10: #{network_forward.1} parent=1 // pred_check
      _
    $region11: #{network_forward.1} parent=1 // pred_check_branch
      %28 = sbr.rel (0) target = $region13
    $region12: #{network_forward.1} parent=1 // pred_region
      %s30 = ssub.s32 2048, 2048
      %31 = vsyncadd [#allocation5], %s30
      %s32 = sshll.u32 [#allocation4], 4
      %s33 = int_to_ptr.vmem [resolvable:$true] %s32
      %38 = dma.hbm_to_vmem [thread:$0]  %s2, 2048, %s33, [#allocation5], 128, 128, 8
    $region13: #{network_forward.1} parent=1 // pred_fallthru
      _
    // Predicated region
    $region14: #{network_forward.1} parent=1 // pred_check
      _
    $region15: #{network_forward.1} parent=1 // pred_check_branch
      %40 = sbr.rel (0) target = $region17
    $region16: #{network_forward.1} parent=1 // pred_region
      _
    $region17: #{network_forward.1} parent=1 // pred_fallthru
      _
    // Predicated region
    $region18: #{network_forward.1} parent=1 // pred_check
      _
    $region19: #{network_forward.1} parent=1 // pred_check_branch
      %42 = sbr.rel (0) target = $region21
    $region20: #{network_forward.1} parent=1 // pred_region
      %s44 = ssub.s32 16384, 16384
      %45 = vsyncadd [#allocation5], %s44
      %s46 = sshll.u32 [#allocation6], 4
      %s47 = int_to_ptr.vmem [resolvable:$true] %s46
      %52 = dma.hbm_to_vmem [thread:$0]  %s4, 16384, %s47, [#allocation5], 256, 256, 16
    $region21: #{network_forward.1} parent=1 // pred_fallthru
      _
    // Predicated region
    $region22: #{network_forward.1} parent=1 // pred_check
      _
    $region23: #{network_forward.1} parent=1 // pred_check_branch
      %54 = sbr.rel (0) target = $region25
    $region24: #{network_forward.1} parent=1 // pred_region
      _
    $region25: #{network_forward.1} parent=1 // pred_fallthru
      _
    // Predicated region
    $region26: #{network_forward.1} parent=1 // pred_check
      _
    $region27: #{network_forward.1} parent=1 // pred_check_branch
      %56 = sbr.rel (0) target = $region29
    $region28: #{network_forward.1} parent=1 // pred_region
      %57 = dma.done [#allocation3], 2048
    $region29: #{network_forward.1} parent=1 // pred_fallthru
      _
    // Predicated region
    $region30: #{network_forward.1} parent=1 // pred_check
      _
    $region31: #{network_forward.1} parent=1 // pred_check_branch
      %59 = sbr.rel (0) target = $region33
    $region32: #{network_forward.1} parent=1 // pred_region
      %60 = dma.done [#allocation5], 2048
    $region33: #{network_forward.1} parent=1 // pred_fallthru
      _
    // Predicated region
    $region34: #{network_forward.1} parent=1 // pred_check
      _
    $region35: #{network_forward.1} parent=1 // pred_check_branch
      %62 = sbr.rel (0) target = $region37
    $region36: #{network_forward.1} parent=1 // pred_region
      %63 = dma.done [#allocation5], 16384
    $region37: #{network_forward.1} parent=1 // pred_fallthru
      _
    %v64 = vld [vmem:[%s1] sm:$0x1]
    %v65 = vlaneseq
    %v66 = vshrl.u32 %v65, 7
    %v67 = vlaneseq
    %v68 = vand.u32 %v67, 127
    %v69 = vshra.s32 %v68, 4
    %vm70 = vcmp.eq.s32.totalorder %v69, %v66
    %v72 = vlaneseq
    %v73 = vshrl.u32 %v72, 7
    %v74 = vsub.s32 0, %v73
    %v75 = vrot.slane %v64, %v74
    %v77 = vsel %vm70, %v75, 0.0
    %v78 = vld [vmem:[#allocation2] sm:$0xff]
    %v79 = vld [vmem:[#allocation2 + $0x8] sm:$0xff]
    %v80 = vld [vmem:[#allocation2 + $0x10] sm:$0xff]
    %v81 = vld [vmem:[#allocation2 + $0x18] sm:$0xff]
    %v82 = vld [vmem:[#allocation2 + $0x20] sm:$0xff]
    %v83 = vld [vmem:[#allocation2 + $0x28] sm:$0xff]
    %v84 = vld [vmem:[#allocation2 + $0x30] sm:$0xff]
    %v85 = vld [vmem:[#allocation2 + $0x38] sm:$0xff]
    %v86 = vld [vmem:[#allocation2 + $0x40] sm:$0xff]
    %v87 = vld [vmem:[#allocation2 + $0x48] sm:$0xff]
    %v88 = vld [vmem:[#allocation2 + $0x50] sm:$0xff]
    %v89 = vld [vmem:[#allocation2 + $0x58] sm:$0xff]
    %v90 = vld [vmem:[#allocation2 + $0x60] sm:$0xff]
    %v91 = vld [vmem:[#allocation2 + $0x68] sm:$0xff]
    %v92 = vld [vmem:[#allocation2 + $0x70] sm:$0xff]
    %v93 = vld [vmem:[#allocation2 + $0x78] sm:$0xff]
    %94 = vmatprep.subr.mxu0 0.0
    %95 = vmatpush1.msra.mxu0 %v78
    %96 = vmatprep.subr.mxu0 0.0
    %97 = vmatpush1.msra.mxu0 %v79
    %98 = vmatprep.subr.mxu0 0.0
    %99 = vmatpush1.msra.mxu0 %v80
    %100 = vmatprep.subr.mxu0 0.0
    %101 = vmatpush1.msra.mxu0 %v81
    %102 = vmatprep.subr.mxu0 0.0
    %103 = vmatpush1.msra.mxu0 %v82
    %104 = vmatprep.subr.mxu0 0.0
    %105 = vmatpush1.msra.mxu0 %v83
    %106 = vmatprep.subr.mxu0 0.0
    %107 = vmatpush1.msra.mxu0 %v84
    %108 = vmatprep.subr.mxu0 0.0
    %109 = vmatpush1.msra.mxu0 %v85
    %110 = vmatprep.subr.mxu0 0.0
    %111 = vmatpush1.msra.mxu0 %v86
    %112 = vmatprep.subr.mxu0 0.0
    %113 = vmatpush1.msra.mxu0 %v87
    %114 = vmatprep.subr.mxu0 0.0
    %115 = vmatpush1.msra.mxu0 %v88
    %116 = vmatprep.subr.mxu0 0.0
    %117 = vmatpush1.msra.mxu0 %v89
    %118 = vmatprep.subr.mxu0 0.0
    %119 = vmatpush1.msra.mxu0 %v90
    %120 = vmatprep.subr.mxu0 0.0
    %121 = vmatpush1.msra.mxu0 %v91
    %122 = vmatprep.subr.mxu0 0.0
    %123 = vmatpush1.msra.mxu0 %v92
    %124 = vmatprep.subr.mxu0 0.0
    %125 = vmatpush1.msra.mxu0 %v93
    %126 = vmatprep.subr.mxu0 0.0
    %127 = vmatpush1.msra.mxu0 0.0
    %128 = vmatprep.subr.mxu0 0.0
    %129 = vmatpush1.msra.mxu0 0.0
    %130 = vmatprep.subr.mxu0 0.0
    %131 = vmatpush1.msra.mxu0 0.0
    %132 = vmatprep.subr.mxu0 0.0
    %133 = vmatpush1.msra.mxu0 0.0
    %134 = vmatprep.subr.mxu0 0.0
    %135 = vmatpush1.msra.mxu0 0.0
    %136 = vmatprep.subr.mxu0 0.0
    %137 = vmatpush1.msra.mxu0 0.0
    %138 = vmatprep.subr.mxu0 0.0
    %139 = vmatpush1.msra.mxu0 0.0
    %140 = vmatprep.subr.mxu0 0.0
    %141 = vmatpush1.msra.mxu0 0.0
    %142 = vmatprep.subr.mxu0 0.0
    %143 = vmatpush1.msra.mxu0 0.0
    %144 = vmatprep.subr.mxu0 0.0
    %145 = vmatpush1.msra.mxu0 0.0
    %146 = vmatprep.subr.mxu0 0.0
    %147 = vmatpush1.msra.mxu0 0.0
    %148 = vmatprep.subr.mxu0 0.0
    %149 = vmatpush1.msra.mxu0 0.0
    %150 = vmatprep.subr.mxu0 0.0
    %151 = vmatpush1.msra.mxu0 0.0
    %152 = vmatprep.subr.mxu0 0.0
    %153 = vmatpush1.msra.mxu0 0.0
    %154 = vmatprep.subr.mxu0 0.0
    %155 = vmatpush1.msra.mxu0 0.0
    %156 = vmatprep.subr.mxu0 0.0
    %157 = vmatpush1.msra.mxu0 0.0
    %158 = vmatprep.mubr.f32.mxu0 0.0
    %159 = vmatmul.mubr.f32.gmra.mrb[0].mxu0 %v77
    %v160 = vpop.f32.mrb[0].mxu0
    %v161 = vadd.f32 0.0, %v160
    %v162 = vpop.f32.mrb[0].mxu0
    %163 = vdwg.mxu0
    %164 = vadd.xlane.f32.xlu0 %v77
    %v165 = vpop.xlane.xlu0 %164
    %v166 = vmax.f32 %v165, 1e-09
    %v167 = vrcp.pop %v166
    %v168 = vmul.f32 %v161, %v167
    %v169 = vld [vmem:[%s3] sm:$0x1]
    %v171 = vlaneseq
    %v172 = vshrl.u32 %v171, 7
    %v173 = vsub.s32 0, %v172
    %v174 = vrot.slane %v169, %v173
    %v176 = vsel %vm70, %v174, 0.0
    %v177 = vld [vmem:[#allocation4] sm:$0xff]
    %v178 = vld [vmem:[#allocation4 + $0x8] sm:$0xff]
    %v179 = vld [vmem:[#allocation4 + $0x10] sm:$0xff]
    %v180 = vld [vmem:[#allocation4 + $0x18] sm:$0xff]
    %v181 = vld [vmem:[#allocation4 + $0x20] sm:$0xff]
    %v182 = vld [vmem:[#allocation4 + $0x28] sm:$0xff]
    %v183 = vld [vmem:[#allocation4 + $0x30] sm:$0xff]
    %v184 = vld [vmem:[#allocation4 + $0x38] sm:$0xff]
    %v185 = vld [vmem:[#allocation4 + $0x40] sm:$0xff]
    %v186 = vld [vmem:[#allocation4 + $0x48] sm:$0xff]
    %v187 = vld [vmem:[#allocation4 + $0x50] sm:$0xff]
    %v188 = vld [vmem:[#allocation4 + $0x58] sm:$0xff]
    %v189 = vld [vmem:[#allocation4 + $0x60] sm:$0xff]
    %v190 = vld [vmem:[#allocation4 + $0x68] sm:$0xff]
    %v191 = vld [vmem:[#allocation4 + $0x70] sm:$0xff]
    %v192 = vld [vmem:[#allocation4 + $0x78] sm:$0xff]
    %193 = vmatprep.subr.mxu0 0.0
    %194 = vmatpush1.msra.mxu0 %v177
    %195 = vmatprep.subr.mxu0 0.0
    %196 = vmatpush1.msra.mxu0 %v178
    %197 = vmatprep.subr.mxu0 0.0
    %198 = vmatpush1.msra.mxu0 %v179
    %199 = vmatprep.subr.mxu0 0.0
    %200 = vmatpush1.msra.mxu0 %v180
    %201 = vmatprep.subr.mxu0 0.0
    %202 = vmatpush1.msra.mxu0 %v181
    %203 = vmatprep.subr.mxu0 0.0
    %204 = vmatpush1.msra.mxu0 %v182
    %205 = vmatprep.subr.mxu0 0.0
    %206 = vmatpush1.msra.mxu0 %v183
    %207 = vmatprep.subr.mxu0 0.0
    %208 = vmatpush1.msra.mxu0 %v184
    %209 = vmatprep.subr.mxu0 0.0
    %210 = vmatpush1.msra.mxu0 %v185
    %211 = vmatprep.subr.mxu0 0.0
    %212 = vmatpush1.msra.mxu0 %v186
    %213 = vmatprep.subr.mxu0 0.0
    %214 = vmatpush1.msra.mxu0 %v187
    %215 = vmatprep.subr.mxu0 0.0
    %216 = vmatpush1.msra.mxu0 %v188
    %217 = vmatprep.subr.mxu0 0.0
    %218 = vmatpush1.msra.mxu0 %v189
    %219 = vmatprep.subr.mxu0 0.0
    %220 = vmatpush1.msra.mxu0 %v190
    %221 = vmatprep.subr.mxu0 0.0
    %222 = vmatpush1.msra.mxu0 %v191
    %223 = vmatprep.subr.mxu0 0.0
    %224 = vmatpush1.msra.mxu0 %v192
    %225 = vmatprep.subr.mxu0 0.0
    %226 = vmatpush1.msra.mxu0 0.0
    %227 = vmatprep.subr.mxu0 0.0
    %228 = vmatpush1.msra.mxu0 0.0
    %229 = vmatprep.subr.mxu0 0.0
    %230 = vmatpush1.msra.mxu0 0.0
    %231 = vmatprep.subr.mxu0 0.0
    %232 = vmatpush1.msra.mxu0 0.0
    %233 = vmatprep.subr.mxu0 0.0
    %234 = vmatpush1.msra.mxu0 0.0
    %235 = vmatprep.subr.mxu0 0.0
    %236 = vmatpush1.msra.mxu0 0.0
    %237 = vmatprep.subr.mxu0 0.0
    %238 = vmatpush1.msra.mxu0 0.0
    %239 = vmatprep.subr.mxu0 0.0
    %240 = vmatpush1.msra.mxu0 0.0
    %241 = vmatprep.subr.mxu0 0.0
    %242 = vmatpush1.msra.mxu0 0.0
    %243 = vmatprep.subr.mxu0 0.0
    %244 = vmatpush1.msra.mxu0 0.0
    %245 = vmatprep.subr.mxu0 0.0
    %246 = vmatpush1.msra.mxu0 0.0
    %247 = vmatprep.subr.mxu0 0.0
    %248 = vmatpush1.msra.mxu0 0.0
    %249 = vmatprep.subr.mxu0 0.0
    %250 = vmatpush1.msra.mxu0 0.0
    %251 = vmatprep.subr.mxu0 0.0
    %252 = vmatpush1.msra.mxu0 0.0
    %253 = vmatprep.subr.mxu0 0.0
    %254 = vmatpush1.msra.mxu0 0.0
    %255 = vmatprep.subr.mxu0 0.0
    %256 = vmatpush1.msra.mxu0 0.0
    %257 = vmatprep.mubr.f32.mxu0 0.0
    %258 = vmatmul.mubr.f32.gmra.mrb[0].mxu0 %v176
    %v259 = vpop.f32.mrb[0].mxu0
    %v260 = vadd.f32 0.0, %v259
    %v261 = vpop.f32.mrb[0].mxu0
    %262 = vdwg.mxu0
    %263 = vadd.xlane.f32.xlu0 %v176
    %v264 = vpop.xlane.xlu0 %263
    %v265 = vmax.f32 %v264, 1e-09
    %v266 = vrcp.pop %v265
    %v267 = vmul.f32 %v260, %v266
    %v268 = vld [vmem:[%s5] sm:$0xff]
    %v269 = vld [vmem:[%s5 + $0x8] sm:$0xff]
    %v270 = vrot.slane %v168, 4
    %v271 = vadd.f32 %v168, %v270
    %v272 = vrot.slane %v271, 2
    %v273 = vadd.f32 %v271, %v272
    %v274 = vrot.slane %v273, 1
    %v275 = vadd.f32 %v273, %v274
    %v276 = vrot.slane %v267, 4
    %v277 = vadd.f32 %v267, %v276
    %v278 = vrot.slane %v277, 2
    %v279 = vadd.f32 %v277, %v278
    %v280 = vrot.slane %v279, 1
    %v281 = vadd.f32 %v279, %v280
    %v282 = vrcp.pop 8.0
    %v283 = vmul.f32 %v275, %v282
    %v284 = vmul.f32 %v281, %v282
    %v285 = vmul.f32 %v168, %v168
    %v286 = vmul.f32 %v267, %v267
    %v287 = vrot.slane %v285, 4
    %v288 = vadd.f32 %v285, %v287
    %v289 = vrot.slane %v288, 2
    %v290 = vadd.f32 %v288, %v289
    %v291 = vrot.slane %v290, 1
    %v292 = vadd.f32 %v290, %v291
    %v293 = vrot.slane %v286, 4
    %v294 = vadd.f32 %v286, %v293
    %v295 = vrot.slane %v294, 2
    %v296 = vadd.f32 %v294, %v295
    %v297 = vrot.slane %v296, 1
    %v298 = vadd.f32 %v296, %v297
    %v299 = vmul.f32 %v292, %v282
    %v300 = vmul.f32 %v298, %v282
    %v301 = vsub.f32 %v168, %v283
    %v302 = vsub.f32 %v267, %v284
    %v303 = vmul.f32 %v283, %v283
    %v304 = vmul.f32 %v284, %v284
    %v305 = vsub.f32 %v299, %v303
    %v306 = vsub.f32 %v300, %v304
    %v307 = vmax.f32 %v305, 0.0
    %v308 = vmax.f32 %v306, 0.0
    %v309 = vadd.f32 %v307, 1e-05
    %v310 = vadd.f32 %v308, 1e-05
    %v311 = vrsqrt.pop %v309
    %v312 = vrsqrt.pop %v310
    %v313 = vmul.f32 %v301, %v311
    %v314 = vmul.f32 %v302, %v312
    %v315 = vlaneseq
    %v316 = vshrl.u32 %v315, 7
    %v317 = vsub.s32 0, %v316
    %v318 = vrot.slane %v268, %v317
    %v319 = vlaneseq
    %v320 = vshrl.u32 %v319, 7
    %v321 = vsub.s32 0, %v320
    %v322 = vrot.slane %v269, %v321
    %v323 = vmul.f32 %v313, %v318
    %v324 = vmul.f32 %v313, %v322
    %v325 = vmul.f32 %v314, %v318
    %v326 = vmul.f32 %v314, %v322
    %v327 = vlaneseq
    %v328 = vshrl.u32 %v327, 7
    %v329 = vsub.s32 1, %v328
    %v330 = vrot.slane %v268, %v329
    %v331 = vlaneseq
    %v332 = vshrl.u32 %v331, 7
    %v333 = vsub.s32 1, %v332
    %v334 = vrot.slane %v269, %v333
    %v335 = vadd.f32 %v323, %v330
    %v336 = vadd.f32 %v324, %v334
    %v337 = vadd.f32 %v325, %v330
    %v338 = vadd.f32 %v326, %v334
    %v339 = vmax.f32 %v335, 0.0
    %v340 = vmax.f32 %v336, 0.0
    %v341 = vmax.f32 %v337, 0.0
    %v342 = vmax.f32 %v338, 0.0
    %v343 = vld [vmem:[#allocation6] sm:$0xff]
    %v344 = vld [vmem:[#allocation6 + $0x8] sm:$0xff]
    %v345 = vld [vmem:[#allocation6 + $0x10] sm:$0xff]
    %v346 = vld [vmem:[#allocation6 + $0x18] sm:$0xff]
    %v347 = vld [vmem:[#allocation6 + $0x20] sm:$0xff]
    %v348 = vld [vmem:[#allocation6 + $0x28] sm:$0xff]
    %v349 = vld [vmem:[#allocation6 + $0x30] sm:$0xff]
    %v350 = vld [vmem:[#allocation6 + $0x38] sm:$0xff]
    %v351 = vld [vmem:[#allocation6 + $0x40] sm:$0xff]
    %v352 = vld [vmem:[#allocation6 + $0x48] sm:$0xff]
    %v353 = vld [vmem:[#allocation6 + $0x50] sm:$0xff]
    %v354 = vld [vmem:[#allocation6 + $0x58] sm:$0xff]
    %v355 = vld [vmem:[#allocation6 + $0x60] sm:$0xff]
    %v356 = vld [vmem:[#allocation6 + $0x68] sm:$0xff]
    %v357 = vld [vmem:[#allocation6 + $0x70] sm:$0xff]
    %v358 = vld [vmem:[#allocation6 + $0x78] sm:$0xff]
    %v359 = vld [vmem:[#allocation6 + $0x80] sm:$0xff]
    %v360 = vld [vmem:[#allocation6 + $0x88] sm:$0xff]
    %v361 = vld [vmem:[#allocation6 + $0x90] sm:$0xff]
    %v362 = vld [vmem:[#allocation6 + $0x98] sm:$0xff]
    %v363 = vld [vmem:[#allocation6 + $0xa0] sm:$0xff]
    %v364 = vld [vmem:[#allocation6 + $0xa8] sm:$0xff]
    %v365 = vld [vmem:[#allocation6 + $0xb0] sm:$0xff]
    %v366 = vld [vmem:[#allocation6 + $0xb8] sm:$0xff]
    %v367 = vld [vmem:[#allocation6 + $0xc0] sm:$0xff]
    %v368 = vld [vmem:[#allocation6 + $0xc8] sm:$0xff]
    %v369 = vld [vmem:[#allocation6 + $0xd0] sm:$0xff]
    %v370 = vld [vmem:[#allocation6 + $0xd8] sm:$0xff]
    %v371 = vld [vmem:[#allocation6 + $0xe0] sm:$0xff]
    %v372 = vld [vmem:[#allocation6 + $0xe8] sm:$0xff]
    %v373 = vld [vmem:[#allocation6 + $0xf0] sm:$0xff]
    %v374 = vld [vmem:[#allocation6 + $0xf8] sm:$0xff]
    %v375 = vld [vmem:[#allocation6 + $0x100] sm:$0xff]
    %v376 = vld [vmem:[#allocation6 + $0x108] sm:$0xff]
    %v377 = vld [vmem:[#allocation6 + $0x110] sm:$0xff]
    %v378 = vld [vmem:[#allocation6 + $0x118] sm:$0xff]
    %v379 = vld [vmem:[#allocation6 + $0x120] sm:$0xff]
    %v380 = vld [vmem:[#allocation6 + $0x128] sm:$0xff]
    %v381 = vld [vmem:[#allocation6 + $0x130] sm:$0xff]
    %v382 = vld [vmem:[#allocation6 + $0x138] sm:$0xff]
    %v383 = vld [vmem:[#allocation6 + $0x140] sm:$0xff]
    %v384 = vld [vmem:[#allocation6 + $0x148] sm:$0xff]
    %v385 = vld [vmem:[#allocation6 + $0x150] sm:$0xff]
    %v386 = vld [vmem:[#allocation6 + $0x158] sm:$0xff]
    %v387 = vld [vmem:[#allocation6 + $0x160] sm:$0xff]
    %v388 = vld [vmem:[#allocation6 + $0x168] sm:$0xff]
    %v389 = vld [vmem:[#allocation6 + $0x170] sm:$0xff]
    %v390 = vld [vmem:[#allocation6 + $0x178] sm:$0xff]
    %v391 = vld [vmem:[#allocation6 + $0x180] sm:$0xff]
    %v392 = vld [vmem:[#allocation6 + $0x188] sm:$0xff]
    %v393 = vld [vmem:[#allocation6 + $0x190] sm:$0xff]
    %v394 = vld [vmem:[#allocation6 + $0x198] sm:$0xff]
    %v395 = vld [vmem:[#allocation6 + $0x1a0] sm:$0xff]
    %v396 = vld [vmem:[#allocation6 + $0x1a8] sm:$0xff]
    %v397 = vld [vmem:[#allocation6 + $0x1b0] sm:$0xff]
    %v398 = vld [vmem:[#allocation6 + $0x1b8] sm:$0xff]
    %v399 = vld [vmem:[#allocation6 + $0x1c0] sm:$0xff]
    %v400 = vld [vmem:[#allocation6 + $0x1c8] sm:$0xff]
    %v401 = vld [vmem:[#allocation6 + $0x1d0] sm:$0xff]
    %v402 = vld [vmem:[#allocation6 + $0x1d8] sm:$0xff]
    %v403 = vld [vmem:[#allocation6 + $0x1e0] sm:$0xff]
    %v404 = vld [vmem:[#allocation6 + $0x1e8] sm:$0xff]
    %v405 = vld [vmem:[#allocation6 + $0x1f0] sm:$0xff]
    %v406 = vld [vmem:[#allocation6 + $0x1f8] sm:$0xff]
    %v407 = vlaneseq
    %v408 = vshrl.u32 %v407, 7
    %v409 = vsub.s32 2, %v408
    %v410 = vrot.slane %v268, %v409
    %v411 = vlaneseq
    %v412 = vshrl.u32 %v411, 7
    %v413 = vsub.s32 2, %v412
    %v414 = vrot.slane %v269, %v413
    %415 = vmatprep.subr.mxu0 %v344
    %416 = vmatpush1.msra.mxu0 %v343
    %417 = vmatprep.subr.mxu0 %v346
    %418 = vmatpush1.msra.mxu0 %v345
    %419 = vmatprep.subr.mxu0 %v348
    %420 = vmatpush1.msra.mxu0 %v347
    %421 = vmatprep.subr.mxu0 %v350
    %422 = vmatpush1.msra.mxu0 %v349
    %423 = vmatprep.subr.mxu0 %v352
    %424 = vmatpush1.msra.mxu0 %v351
    %425 = vmatprep.subr.mxu0 %v354
    %426 = vmatpush1.msra.mxu0 %v353
    %427 = vmatprep.subr.mxu0 %v356
    %428 = vmatpush1.msra.mxu0 %v355
    %429 = vmatprep.subr.mxu0 %v358
    %430 = vmatpush1.msra.mxu0 %v357
    %431 = vmatprep.subr.mxu0 %v360
    %432 = vmatpush1.msra.mxu0 %v359
    %433 = vmatprep.subr.mxu0 %v362
    %434 = vmatpush1.msra.mxu0 %v361
    %435 = vmatprep.subr.mxu0 %v364
    %436 = vmatpush1.msra.mxu0 %v363
    %437 = vmatprep.subr.mxu0 %v366
    %438 = vmatpush1.msra.mxu0 %v365
    %439 = vmatprep.subr.mxu0 %v368
    %440 = vmatpush1.msra.mxu0 %v367
    %441 = vmatprep.subr.mxu0 %v370
    %442 = vmatpush1.msra.mxu0 %v369
    %443 = vmatprep.subr.mxu0 %v372
    %444 = vmatpush1.msra.mxu0 %v371
    %445 = vmatprep.subr.mxu0 %v374
    %446 = vmatpush1.msra.mxu0 %v373
    %447 = vmatprep.subr.mxu0 %v376
    %448 = vmatpush1.msra.mxu0 %v375
    %449 = vmatprep.subr.mxu0 %v378
    %450 = vmatpush1.msra.mxu0 %v377
    %451 = vmatprep.subr.mxu0 %v380
    %452 = vmatpush1.msra.mxu0 %v379
    %453 = vmatprep.subr.mxu0 %v382
    %454 = vmatpush1.msra.mxu0 %v381
    %455 = vmatprep.subr.mxu0 %v384
    %456 = vmatpush1.msra.mxu0 %v383
    %457 = vmatprep.subr.mxu0 %v386
    %458 = vmatpush1.msra.mxu0 %v385
    %459 = vmatprep.subr.mxu0 %v388
    %460 = vmatpush1.msra.mxu0 %v387
    %461 = vmatprep.subr.mxu0 %v390
    %462 = vmatpush1.msra.mxu0 %v389
    %463 = vmatprep.subr.mxu0 %v392
    %464 = vmatpush1.msra.mxu0 %v391
    %465 = vmatprep.subr.mxu0 %v394
    %466 = vmatpush1.msra.mxu0 %v393
    %467 = vmatprep.subr.mxu0 %v396
    %468 = vmatpush1.msra.mxu0 %v395
    %469 = vmatprep.subr.mxu0 %v398
    %470 = vmatpush1.msra.mxu0 %v397
    %471 = vmatprep.subr.mxu0 %v400
    %472 = vmatpush1.msra.mxu0 %v399
    %473 = vmatprep.subr.mxu0 %v402
    %474 = vmatpush1.msra.mxu0 %v401
    %475 = vmatprep.subr.mxu0 %v404
    %476 = vmatpush1.msra.mxu0 %v403
    %477 = vmatprep.subr.mxu0 %v406
    %478 = vmatpush1.msra.mxu0 %v405
    %479 = vmatprep.mubr.f32.mxu0 %v340
    %480 = vmatmul.mubr.f32.gmra.mrb[0].mxu0 %v339
    %v481 = vpop.f32.mrb[0].mxu0
    %v482 = vadd.f32 %v410, %v481
    %v483 = vpop.f32.mrb[0].mxu0
    %v484 = vadd.f32 %v414, %v483
    %485 = vmatprep.mubr.f32.mxu0 %v342
    %486 = vmatmul.mubr.f32.gmra.mrb[0].mxu0 %v341
    %v487 = vpop.f32.mrb[0].mxu0
    %v488 = vadd.f32 %v410, %v487
    %v489 = vpop.f32.mrb[0].mxu0
    %v490 = vadd.f32 %v414, %v489
    %491 = vdwg.mxu0
    %v492 = vrot.slane %v482, 4
    %v493 = vadd.f32 %v482, %v492
    %v494 = vrot.slane %v493, 2
    %v495 = vadd.f32 %v493, %v494
    %v496 = vrot.slane %v495, 1
    %v497 = vadd.f32 %v495, %v496
    %v498 = vrot.slane %v484, 4
    %v499 = vadd.f32 %v484, %v498
    %v500 = vrot.slane %v499, 2
    %v501 = vadd.f32 %v499, %v500
    %v502 = vrot.slane %v501, 1
    %v503 = vadd.f32 %v501, %v502
    %v504 = vrot.slane %v488, 4
    %v505 = vadd.f32 %v488, %v504
    %v506 = vrot.slane %v505, 2
    %v507 = vadd.f32 %v505, %v506
    %v508 = vrot.slane %v507, 1
    %v509 = vadd.f32 %v507, %v508
    %v510 = vrot.slane %v490, 4
    %v511 = vadd.f32 %v490, %v510
    %v512 = vrot.slane %v511, 2
    %v513 = vadd.f32 %v511, %v512
    %v514 = vrot.slane %v513, 1
    %v515 = vadd.f32 %v513, %v514
    %v516 = vmul.f32 %v497, %v282
    %v517 = vmul.f32 %v503, %v282
    %v518 = vmul.f32 %v509, %v282
    %v519 = vmul.f32 %v515, %v282
    %v520 = vmul.f32 %v482, %v482
    %v521 = vmul.f32 %v484, %v484
    %v522 = vmul.f32 %v488, %v488
    %v523 = vmul.f32 %v490, %v490
    %v524 = vrot.slane %v520, 4
    %v525 = vadd.f32 %v520, %v524
    %v526 = vrot.slane %v525, 2
    %v527 = vadd.f32 %v525, %v526
    %v528 = vrot.slane %v527, 1
    %v529 = vadd.f32 %v527, %v528
    %v530 = vrot.slane %v521, 4
    %v531 = vadd.f32 %v521, %v530
    %v532 = vrot.slane %v531, 2
    %v533 = vadd.f32 %v531, %v532
    %v534 = vrot.slane %v533, 1
    %v535 = vadd.f32 %v533, %v534
    %v536 = vrot.slane %v522, 4
    %v537 = vadd.f32 %v522, %v536
    %v538 = vrot.slane %v537, 2
    %v539 = vadd.f32 %v537, %v538
    %v540 = vrot.slane %v539, 1
    %v541 = vadd.f32 %v539, %v540
    %v542 = vrot.slane %v523, 4
    %v543 = vadd.f32 %v523, %v542
    %v544 = vrot.slane %v543, 2
    %v545 = vadd.f32 %v543, %v544
    %v546 = vrot.slane %v545, 1
    %v547 = vadd.f32 %v545, %v546
    %v548 = vmul.f32 %v529, %v282
    %v549 = vmul.f32 %v535, %v282
    %v550 = vmul.f32 %v541, %v282
    %v551 = vmul.f32 %v547, %v282
    %v552 = vmul.f32 %v516, %v516
    %v553 = vmul.f32 %v517, %v517
    %v554 = vmul.f32 %v518, %v518
    %v555 = vmul.f32 %v519, %v519
    %v556 = vsub.f32 %v548, %v552
    %v557 = vsub.f32 %v549, %v553
    %v558 = vsub.f32 %v550, %v554
    %v559 = vsub.f32 %v551, %v555
    %v560 = vmax.f32 %v556, 0.0
    %v561 = vmax.f32 %v557, 0.0
    %v562 = vmax.f32 %v558, 0.0
    %v563 = vmax.f32 %v559, 0.0
    %v564 = vsub.f32 %v482, %v516
    %v565 = vsub.f32 %v484, %v517
    %v566 = vsub.f32 %v488, %v518
    %v567 = vsub.f32 %v490, %v519
    %v568 = vadd.f32 %v560, 1e-05
    %v569 = vadd.f32 %v561, 1e-05
    %v570 = vadd.f32 %v562, 1e-05
    %v571 = vadd.f32 %v563, 1e-05
    %v572 = vrsqrt.pop %v568
    %v573 = vrsqrt.pop %v569
    %v574 = vrsqrt.pop %v570
    %v575 = vrsqrt.pop %v571
    %v576 = vmul.f32 %v564, %v572
    %v577 = vmul.f32 %v565, %v573
    %v578 = vmul.f32 %v566, %v574
    %v579 = vmul.f32 %v567, %v575
    %v580 = vlaneseq
    %v581 = vshrl.u32 %v580, 7
    %v582 = vsub.s32 3, %v581
    %v583 = vrot.slane %v268, %v582
    %v584 = vlaneseq
    %v585 = vshrl.u32 %v584, 7
    %v586 = vsub.s32 3, %v585
    %v587 = vrot.slane %v269, %v586
    %v588 = vmul.f32 %v576, %v583
    %v589 = vmul.f32 %v577, %v587
    %v590 = vmul.f32 %v578, %v583
    %v591 = vmul.f32 %v579, %v587
    %v592 = vlaneseq
    %v593 = vshrl.u32 %v592, 7
    %v594 = vsub.s32 4, %v593
    %v595 = vrot.slane %v268, %v594
    %v596 = vlaneseq
    %v597 = vshrl.u32 %v596, 7
    %v598 = vsub.s32 4, %v597
    %v599 = vrot.slane %v269, %v598
    %v600 = vadd.f32 %v588, %v595
    %v601 = vadd.f32 %v589, %v599
    %v602 = vadd.f32 %v590, %v595
    %v603 = vadd.f32 %v591, %v599
    %v604 = vmax.f32 %v600, 0.0
    %v605 = vmax.f32 %v601, 0.0
    %v606 = vmax.f32 %v602, 0.0
    %v607 = vmax.f32 %v603, 0.0
    %s608 = scalar_lea.vmem [#allocation6], 512
    %v609 = vld [vmem:[%s608] sm:$0xff]
    %v610 = vld [vmem:[%s608 + $0x8] sm:$0xff]
    %v611 = vld [vmem:[%s608 + $0x10] sm:$0xff]
    %v612 = vld [vmem:[%s608 + $0x18] sm:$0xff]
    %v613 = vld [vmem:[%s608 + $0x20] sm:$0xff]
    %v614 = vld [vmem:[%s608 + $0x28] sm:$0xff]
    %v615 = vld [vmem:[%s608 + $0x30] sm:$0xff]
    %v616 = vld [vmem:[%s608 + $0x38] sm:$0xff]
    %v617 = vld [vmem:[%s608 + $0x40] sm:$0xff]
    %v618 = vld [vmem:[%s608 + $0x48] sm:$0xff]
    %v619 = vld [vmem:[%s608 + $0x50] sm:$0xff]
    %v620 = vld [vmem:[%s608 + $0x58] sm:$0xff]
    %v621 = vld [vmem:[%s608 + $0x60] sm:$0xff]
    %v622 = vld [vmem:[%s608 + $0x68] sm:$0xff]
    %v623 = vld [vmem:[%s608 + $0x70] sm:$0xff]
    %v624 = vld [vmem:[%s608 + $0x78] sm:$0xff]
    %v625 = vld [vmem:[%s608 + $0x80] sm:$0xff]
    %v626 = vld [vmem:[%s608 + $0x88] sm:$0xff]
    %v627 = vld [vmem:[%s608 + $0x90] sm:$0xff]
    %v628 = vld [vmem:[%s608 + $0x98] sm:$0xff]
    %v629 = vld [vmem:[%s608 + $0xa0] sm:$0xff]
    %v630 = vld [vmem:[%s608 + $0xa8] sm:$0xff]
    %v631 = vld [vmem:[%s608 + $0xb0] sm:$0xff]
    %v632 = vld [vmem:[%s608 + $0xb8] sm:$0xff]
    %v633 = vld [vmem:[%s608 + $0xc0] sm:$0xff]
    %v634 = vld [vmem:[%s608 + $0xc8] sm:$0xff]
    %v635 = vld [vmem:[%s608 + $0xd0] sm:$0xff]
    %v636 = vld [vmem:[%s608 + $0xd8] sm:$0xff]
    %v637 = vld [vmem:[%s608 + $0xe0] sm:$0xff]
    %v638 = vld [vmem:[%s608 + $0xe8] sm:$0xff]
    %v639 = vld [vmem:[%s608 + $0xf0] sm:$0xff]
    %v640 = vld [vmem:[%s608 + $0xf8] sm:$0xff]
    %v641 = vld [vmem:[%s608 + $0x100] sm:$0xff]
    %v642 = vld [vmem:[%s608 + $0x108] sm:$0xff]
    %v643 = vld [vmem:[%s608 + $0x110] sm:$0xff]
    %v644 = vld [vmem:[%s608 + $0x118] sm:$0xff]
    %v645 = vld [vmem:[%s608 + $0x120] sm:$0xff]
    %v646 = vld [vmem:[%s608 + $0x128] sm:$0xff]
    %v647 = vld [vmem:[%s608 + $0x130] sm:$0xff]
    %v648 = vld [vmem:[%s608 + $0x138] sm:$0xff]
    %v649 = vld [vmem:[%s608 + $0x140] sm:$0xff]
    %v650 = vld [vmem:[%s608 + $0x148] sm:$0xff]
    %v651 = vld [vmem:[%s608 + $0x150] sm:$0xff]
    %v652 = vld [vmem:[%s608 + $0x158] sm:$0xff]
    %v653 = vld [vmem:[%s608 + $0x160] sm:$0xff]
    %v654 = vld [vmem:[%s608 + $0x168] sm:$0xff]
    %v655 = vld [vmem:[%s608 + $0x170] sm:$0xff]
    %v656 = vld [vmem:[%s608 + $0x178] sm:$0xff]
    %v657 = vld [vmem:[%s608 + $0x180] sm:$0xff]
    %v658 = vld [vmem:[%s608 + $0x188] sm:$0xff]
    %v659 = vld [vmem:[%s608 + $0x190] sm:$0xff]
    %v660 = vld [vmem:[%s608 + $0x198] sm:$0xff]
    %v661 = vld [vmem:[%s608 + $0x1a0] sm:$0xff]
    %v662 = vld [vmem:[%s608 + $0x1a8] sm:$0xff]
    %v663 = vld [vmem:[%s608 + $0x1b0] sm:$0xff]
    %v664 = vld [vmem:[%s608 + $0x1b8] sm:$0xff]
    %v665 = vld [vmem:[%s608 + $0x1c0] sm:$0xff]
    %v666 = vld [vmem:[%s608 + $0x1c8] sm:$0xff]
    %v667 = vld [vmem:[%s608 + $0x1d0] sm:$0xff]
    %v668 = vld [vmem:[%s608 + $0x1d8] sm:$0xff]
    %v669 = vld [vmem:[%s608 + $0x1e0] sm:$0xff]
    %v670 = vld [vmem:[%s608 + $0x1e8] sm:$0xff]
    %v671 = vld [vmem:[%s608 + $0x1f0] sm:$0xff]
    %v672 = vld [vmem:[%s608 + $0x1f8] sm:$0xff]
    %v673 = vlaneseq
    %v674 = vshrl.u32 %v673, 7
    %v675 = vsub.s32 5, %v674
    %v676 = vrot.slane %v268, %v675
    %v677 = vlaneseq
    %v678 = vshrl.u32 %v677, 7
    %v679 = vsub.s32 5, %v678
    %v680 = vrot.slane %v269, %v679
    %681 = vmatprep.subr.mxu0 %v610
    %682 = vmatpush1.msra.mxu0 %v609
    %683 = vmatprep.subr.mxu0 %v612
    %684 = vmatpush1.msra.mxu0 %v611
    %685 = vmatprep.subr.mxu0 %v614
    %686 = vmatpush1.msra.mxu0 %v613
    %687 = vmatprep.subr.mxu0 %v616
    %688 = vmatpush1.msra.mxu0 %v615
    %689 = vmatprep.subr.mxu0 %v618
    %690 = vmatpush1.msra.mxu0 %v617
    %691 = vmatprep.subr.mxu0 %v620
    %692 = vmatpush1.msra.mxu0 %v619
    %693 = vmatprep.subr.mxu0 %v622
    %694 = vmatpush1.msra.mxu0 %v621
    %695 = vmatprep.subr.mxu0 %v624
    %696 = vmatpush1.msra.mxu0 %v623
    %697 = vmatprep.subr.mxu0 %v626
    %698 = vmatpush1.msra.mxu0 %v625
    %699 = vmatprep.subr.mxu0 %v628
    %700 = vmatpush1.msra.mxu0 %v627
    %701 = vmatprep.subr.mxu0 %v630
    %702 = vmatpush1.msra.mxu0 %v629
    %703 = vmatprep.subr.mxu0 %v632
    %704 = vmatpush1.msra.mxu0 %v631
    %705 = vmatprep.subr.mxu0 %v634
    %706 = vmatpush1.msra.mxu0 %v633
    %707 = vmatprep.subr.mxu0 %v636
    %708 = vmatpush1.msra.mxu0 %v635
    %709 = vmatprep.subr.mxu0 %v638
    %710 = vmatpush1.msra.mxu0 %v637
    %711 = vmatprep.subr.mxu0 %v640
    %712 = vmatpush1.msra.mxu0 %v639
    %713 = vmatprep.subr.mxu0 %v642
    %714 = vmatpush1.msra.mxu0 %v641
    %715 = vmatprep.subr.mxu0 %v644
    %716 = vmatpush1.msra.mxu0 %v643
    %717 = vmatprep.subr.mxu0 %v646
    %718 = vmatpush1.msra.mxu0 %v645
    %719 = vmatprep.subr.mxu0 %v648
    %720 = vmatpush1.msra.mxu0 %v647
    %721 = vmatprep.subr.mxu0 %v650
    %722 = vmatpush1.msra.mxu0 %v649
    %723 = vmatprep.subr.mxu0 %v652
    %724 = vmatpush1.msra.mxu0 %v651
    %725 = vmatprep.subr.mxu0 %v654
    %726 = vmatpush1.msra.mxu0 %v653
    %727 = vmatprep.subr.mxu0 %v656
    %728 = vmatpush1.msra.mxu0 %v655
    %729 = vmatprep.subr.mxu0 %v658
    %730 = vmatpush1.msra.mxu0 %v657
    %731 = vmatprep.subr.mxu0 %v660
    %732 = vmatpush1.msra.mxu0 %v659
    %733 = vmatprep.subr.mxu0 %v662
    %734 = vmatpush1.msra.mxu0 %v661
    %735 = vmatprep.subr.mxu0 %v664
    %736 = vmatpush1.msra.mxu0 %v663
    %737 = vmatprep.subr.mxu0 %v666
    %738 = vmatpush1.msra.mxu0 %v665
    %739 = vmatprep.subr.mxu0 %v668
    %740 = vmatpush1.msra.mxu0 %v667
    %741 = vmatprep.subr.mxu0 %v670
    %742 = vmatpush1.msra.mxu0 %v669
    %743 = vmatprep.subr.mxu0 %v672
    %744 = vmatpush1.msra.mxu0 %v671
    %745 = vmatprep.mubr.f32.mxu0 %v605
    %746 = vmatmul.mubr.f32.gmra.mrb[0].mxu0 %v604
    %v747 = vpop.f32.mrb[0].mxu0
    %v748 = vadd.f32 %v676, %v747
    %v749 = vpop.f32.mrb[0].mxu0
    %v750 = vadd.f32 %v680, %v749
    %751 = vmatprep.mubr.f32.mxu0 %v607
    %752 = vmatmul.mubr.f32.gmra.mrb[0].mxu0 %v606
    %v753 = vpop.f32.mrb[0].mxu0
    %v754 = vadd.f32 %v676, %v753
    %v755 = vpop.f32.mrb[0].mxu0
    %v756 = vadd.f32 %v680, %v755
    %757 = vdwg.mxu0
    %v758 = vrot.slane %v748, 4
    %v759 = vadd.f32 %v748, %v758
    %v760 = vrot.slane %v759, 2
    %v761 = vadd.f32 %v759, %v760
    %v762 = vrot.slane %v761, 1
    %v763 = vadd.f32 %v761, %v762
    %v764 = vrot.slane %v750, 4
    %v765 = vadd.f32 %v750, %v764
    %v766 = vrot.slane %v765, 2
    %v767 = vadd.f32 %v765, %v766
    %v768 = vrot.slane %v767, 1
    %v769 = vadd.f32 %v767, %v768
    %v770 = vrot.slane %v754, 4
    %v771 = vadd.f32 %v754, %v770
    %v772 = vrot.slane %v771, 2
    %v773 = vadd.f32 %v771, %v772
    %v774 = vrot.slane %v773, 1
    %v775 = vadd.f32 %v773, %v774
    %v776 = vrot.slane %v756, 4
    %v777 = vadd.f32 %v756, %v776
    %v778 = vrot.slane %v777, 2
    %v779 = vadd.f32 %v777, %v778
    %v780 = vrot.slane %v779, 1
    %v781 = vadd.f32 %v779, %v780
    %v782 = vmul.f32 %v763, %v282
    %v783 = vmul.f32 %v769, %v282
    %v784 = vmul.f32 %v775, %v282
    %v785 = vmul.f32 %v781, %v282
    %v786 = vmul.f32 %v748, %v748
    %v787 = vmul.f32 %v750, %v750
    %v788 = vmul.f32 %v754, %v754
    %v789 = vmul.f32 %v756, %v756
    %v790 = vrot.slane %v786, 4
    %v791 = vadd.f32 %v786, %v790
    %v792 = vrot.slane %v791, 2
    %v793 = vadd.f32 %v791, %v792
    %v794 = vrot.slane %v793, 1
    %v795 = vadd.f32 %v793, %v794
    %v796 = vrot.slane %v787, 4
    %v797 = vadd.f32 %v787, %v796
    %v798 = vrot.slane %v797, 2
    %v799 = vadd.f32 %v797, %v798
    %v800 = vrot.slane %v799, 1
    %v801 = vadd.f32 %v799, %v800
    %v802 = vrot.slane %v788, 4
    %v803 = vadd.f32 %v788, %v802
    %v804 = vrot.slane %v803, 2
    %v805 = vadd.f32 %v803, %v804
    %v806 = vrot.slane %v805, 1
    %v807 = vadd.f32 %v805, %v806
    %v808 = vrot.slane %v789, 4
    %v809 = vadd.f32 %v789, %v808
    %v810 = vrot.slane %v809, 2
    %v811 = vadd.f32 %v809, %v810
    %v812 = vrot.slane %v811, 1
    %v813 = vadd.f32 %v811, %v812
    %v814 = vmul.f32 %v795, %v282
    %v815 = vmul.f32 %v801, %v282
    %v816 = vmul.f32 %v807, %v282
    %v817 = vmul.f32 %v813, %v282
    %v818 = vmul.f32 %v782, %v782
    %v819 = vmul.f32 %v783, %v783
    %v820 = vmul.f32 %v784, %v784
    %v821 = vmul.f32 %v785, %v785
    %v822 = vsub.f32 %v814, %v818
    %v823 = vsub.f32 %v815, %v819
    %v824 = vsub.f32 %v816, %v820
    %v825 = vsub.f32 %v817, %v821
    %v826 = vmax.f32 %v822, 0.0
    %v827 = vmax.f32 %v823, 0.0
    %v828 = vmax.f32 %v824, 0.0
    %v829 = vmax.f32 %v825, 0.0
    %v830 = vsub.f32 %v748, %v782
    %v831 = vsub.f32 %v750, %v783
    %v832 = vsub.f32 %v754, %v784
    %v833 = vsub.f32 %v756, %v785
    %v834 = vadd.f32 %v826, 1e-05
    %v835 = vadd.f32 %v827, 1e-05
    %v836 = vadd.f32 %v828, 1e-05
    %v837 = vadd.f32 %v829, 1e-05
    %v838 = vrsqrt.pop %v834
    %v839 = vrsqrt.pop %v835
    %v840 = vrsqrt.pop %v836
    %v841 = vrsqrt.pop %v837
    %v842 = vmul.f32 %v830, %v838
    %v843 = vmul.f32 %v831, %v839
    %v844 = vmul.f32 %v832, %v840
    %v845 = vmul.f32 %v833, %v841
    %v846 = vlaneseq
    %v847 = vshrl.u32 %v846, 7
    %v848 = vsub.s32 6, %v847
    %v849 = vrot.slane %v268, %v848
    %v850 = vlaneseq
    %v851 = vshrl.u32 %v850, 7
    %v852 = vsub.s32 6, %v851
    %v853 = vrot.slane %v269, %v852
    %v854 = vmul.f32 %v842, %v849
    %v855 = vmul.f32 %v843, %v853
    %v856 = vmul.f32 %v844, %v849
    %v857 = vmul.f32 %v845, %v853
    %v858 = vlaneseq
    %v859 = vshrl.u32 %v858, 7
    %v860 = vsub.s32 7, %v859
    %v861 = vrot.slane %v268, %v860
    %v862 = vlaneseq
    %v863 = vshrl.u32 %v862, 7
    %v864 = vsub.s32 7, %v863
    %v865 = vrot.slane %v269, %v864
    %v866 = vadd.f32 %v854, %v861
    %v867 = vadd.f32 %v855, %v865
    %v868 = vadd.f32 %v856, %v861
    %v869 = vadd.f32 %v857, %v865
    %v870 = vmax.f32 %v866, 0.0
    %v871 = vmax.f32 %v867, 0.0
    %v872 = vmax.f32 %v868, 0.0
    %v873 = vmax.f32 %v869, 0.0
    %v874 = vmul.f32 %v870, %v870
    %v875 = vmul.f32 %v872, %v872
    %876 = vadd.xlane.f32.xlu0 %v874
    %v877 = vpop.xlane.xlu0 %876
    %878 = vadd.xlane.f32.xlu0 %v875
    %v879 = vpop.xlane.xlu0 %878
    %v880 = vmax.f32 %v877, 1e-24
    %v881 = vmax.f32 %v879, 1e-24
    %v882 = vrsqrt.pop %v880
    %v883 = vrsqrt.pop %v881
    %v884 = vmul.f32 %v870, %v882
    %v885 = vmul.f32 %v872, %v883
    %886 = vst [vmem:[%s6] sm:$0xff] %v884
    %887 = vst [vmem:[%s6 + $0x8] sm:$0xff] %v871
    %888 = vst [vmem:[%s6 + $0x10] sm:$0xff] %v885
    %889 = vst [vmem:[%s6 + $0x18] sm:$0xff] %v873
    // Predicated region
    $region38: #{network_forward.1} parent=1 // pred_check
      _
    $region39: #{network_forward.1} parent=1 // pred_check_branch
      %891 = sbr.rel (0) target = $region41
    $region40: #{network_forward.1} parent=1 // pred_region
      _
    $region41: #{network_forward.1} parent=1 // pred_fallthru
      _
    // Predicated region
    $region42: #{network_forward.1} parent=1 // pred_check
      _
    $region43: #{network_forward.1} parent=1 // pred_check_branch
      %893 = sbr.rel (0) target = $region45
    $region44: #{network_forward.1} parent=1 // pred_region
      _
    $region45: #{network_forward.1} parent=1 // pred_fallthru
      _
    %894 = vsyncpa [#allocation3], 1
    %895 = vsyncpa [#allocation5], 1

</llo_original>
